<compile_context>
chip_gen: v5e
topology: v5e:2x2
jax: 0.10.0
libtpu: 0.0.40
codegen_flags: <defaults>
</compile_context>

<pallas_src>
import functools
import math

import jax
import jax.numpy as jnp
from jax import lax
from jax.experimental import pallas as pl
from jax.experimental.pallas import tpu as pltpu


VMEM_LIMIT = 32 * 1024 * 1024  # safe on v5e/v6e (128 MiB phys) and v7x (64 MiB)


def _pick_tile(dim, target):
    """Largest tile <= target that divides dim (falls back to full dim)."""
    t = min(dim, target)
    while dim % t != 0:
        t //= 2
        if t <= 8:
            return dim
    return t


# --------------------------------------------------------------------------
# Tiled matmul (qkv_proj and o_proj; bias=False in the module).
# --------------------------------------------------------------------------
def _matmul_kernel(x_ref, w_ref, o_ref, acc_ref):
    @pl.when(pl.program_id(2) == 0)
    def _init():
        acc_ref[...] = jnp.zeros_like(acc_ref)

    acc_ref[...] += jnp.dot(x_ref[...], w_ref[...],
                            preferred_element_type=jnp.float32)

    @pl.when(pl.program_id(2) == pl.num_programs(2) - 1)
    def _finalize():
        o_ref[...] = acc_ref[...].astype(o_ref.dtype)


def matmul(x, w, *, block_m=256, block_n=256, block_k=512):
    M, K = x.shape
    K2, N = w.shape
    assert K == K2
    tm = _pick_tile(M, block_m)
    tn = _pick_tile(N, block_n)
    tk = _pick_tile(K, block_k)
    cost = pl.CostEstimate(
        flops=2 * M * N * K,
        transcendentals=0,
        bytes_accessed=int((M * K + K * N + M * N) * x.dtype.itemsize),
    )
    return pl.pallas_call(
        _matmul_kernel,
        out_shape=jax.ShapeDtypeStruct((M, N), x.dtype),
        grid=(M // tm, N // tn, K // tk),
        in_specs=[
            pl.BlockSpec((tm, tk), lambda i, j, k: (i, k)),
            pl.BlockSpec((tk, tn), lambda i, j, k: (k, j)),
        ],
        out_specs=pl.BlockSpec((tm, tn), lambda i, j, k: (i, j)),
        scratch_shapes=[pltpu.VMEM((tm, tn), jnp.float32)],
        compiler_params=pltpu.CompilerParams(
            dimension_semantics=("parallel", "parallel", "arbitrary"),
            vmem_limit_bytes=VMEM_LIMIT),
        cost_estimate=cost,
    )(x, w)


# --------------------------------------------------------------------------
# RoPE kernel (neox-style), roll-based, applied once per head.
# Reads the head's columns straight out of the fused qkv activation via the
# BlockSpec index_map; the softmax scale is folded into q here.
# --------------------------------------------------------------------------
def _rope_kernel(x_ref, cos_ref, sin_ref, o_ref, *, scale):
    x = x_ref[...].astype(jnp.float32)                      # [bs, D]
    rotated = pltpu.roll(x, shift=x.shape[1] // 2, axis=1)  # [x2, x1] (XLU)
    out = (x * cos_ref[...] + rotated * sin_ref[...]) * scale
    o_ref[...] = out.astype(o_ref.dtype)


def apply_rope(qkv, cos_full, sin_sgn, *, n_heads, head_offset, head_dim,
               scale, block_s=256):
    S = qkv.shape[0]
    bs = _pick_tile(S, block_s)
    kernel = functools.partial(_rope_kernel, scale=scale)
    return pl.pallas_call(
        kernel,
        out_shape=jax.ShapeDtypeStruct((S, n_heads * head_dim), qkv.dtype),
        grid=(S // bs, n_heads),
        in_specs=[
            pl.BlockSpec((bs, head_dim), lambda i, h: (i, head_offset + h)),
            pl.BlockSpec((bs, head_dim), lambda i, h: (i, 0)),
            pl.BlockSpec((bs, head_dim), lambda i, h: (i, 0)),
        ],
        out_specs=pl.BlockSpec((bs, head_dim), lambda i, h: (i, h)),
        compiler_params=pltpu.CompilerParams(
            dimension_semantics=("parallel", "parallel"),
            vmem_limit_bytes=VMEM_LIMIT),
    )(qkv, cos_full, sin_sgn)


# --------------------------------------------------------------------------
# Flash-style causal GQA attention.
# Grid = (kv_head, q_block, kv_block); one instance handles all `group`
# query heads of that KV head (q block is [tq, group*D] contiguous columns),
# so K/V are loaded once per KV head.  Online softmax with f32 m/l/acc
# scratch, causal block skipping, mask only on diagonal blocks.
# --------------------------------------------------------------------------
def _flash_attn_kernel(q_ref, k_ref, v_ref, o_ref, m_sc, l_sc, acc_sc,
                       *, group, head_dim, block_q, block_k):
    qi = pl.program_id(1)
    ki = pl.program_id(2)
    q_start = qi * block_q
    k_start = ki * block_k

    @pl.when(ki == 0)
    def _init():
        m_sc[...] = jnp.full_like(m_sc, -1e30)
        l_sc[...] = jnp.zeros_like(l_sc)
        acc_sc[...] = jnp.zeros_like(acc_sc)

    def process(masked):
        k = k_ref[...]                                        # [tk, D] bf16
        v = v_ref[...]                                        # [tk, D] bf16
        if masked:
            row = q_start + lax.broadcasted_iota(jnp.int32, (block_q, block_k), 0)
            col = k_start + lax.broadcasted_iota(jnp.int32, (block_q, block_k), 1)
            keep = col <= row
        for g in range(group):                                # unrolled, small
            q_g = q_ref[:, g * head_dim:(g + 1) * head_dim]   # pre-scaled bf16
            s = lax.dot_general(q_g, k, (((1,), (1,)), ((), ())),
                                preferred_element_type=jnp.float32)  # [tq, tk]
            if masked:
                s = jnp.where(keep, s, jnp.float32(-1e30))
            m_prev = m_sc[g]                                  # [tq, 1]
            m_new = jnp.maximum(m_prev, jnp.max(s, axis=-1, keepdims=True))
            alpha = jnp.exp(m_prev - m_new)
            p = jnp.exp(s - m_new)
            l_sc[g] = alpha * l_sc[g] + jnp.sum(p, axis=-1, keepdims=True)
            acc_sc[g] = alpha * acc_sc[g] + jnp.dot(
                p.astype(v.dtype), v, preferred_element_type=jnp.float32)
            m_sc[g] = m_new

    # Blocks fully below/on the diagonal: no mask work.
    @pl.when(k_start + block_k - 1 <= q_start)
    def _unmasked():
        process(False)

    # Blocks straddling the diagonal: apply the causal mask.
    @pl.when(jnp.logical_and(k_start + block_k - 1 > q_start,
                             k_start <= q_start + block_q - 1))
    def _masked():
        process(True)

    # Blocks strictly above the diagonal contribute nothing and are skipped.

    @pl.when(ki == pl.num_programs(2) - 1)
    def _finalize():
        for g in range(group):
            inv_l = pl.reciprocal(l_sc[g], approx=True)       # EUP, ~free
            o_ref[:, g * head_dim:(g + 1) * head_dim] = (
                acc_sc[g] * inv_l).astype(o_ref.dtype)


def flash_attention(q_rot, k_rot, qkv, *, num_heads, num_kv_heads, head_dim,
                    block_q=128, block_k=128):
    S, q_size = q_rot.shape
    assert q_size == num_heads * head_dim
    group = num_heads // num_kv_heads
    bq = _pick_tile(S, block_q)
    bk = _pick_tile(S, block_k)
    kernel = functools.partial(_flash_attn_kernel, group=group,
                               head_dim=head_dim, block_q=bq, block_k=bk)
    cost = pl.CostEstimate(
        flops=2 * num_heads * S * S * head_dim,               # ~causal half of 2 matmuls
        transcendentals=num_heads * S * S // 2,
        bytes_accessed=int(2 * (2 * S * q_size + 4 * S * num_kv_heads * head_dim)),
    )
    return pl.pallas_call(
        kernel,
        out_shape=jax.ShapeDtypeStruct((S, q_size), q_rot.dtype),
        grid=(num_kv_heads, S // bq, S // bk),
        in_specs=[
            # all `group` q heads of this KV head (contiguous columns)
            pl.BlockSpec((bq, group * head_dim),
                         lambda kvh, qi, ki: (qi, kvh)),
            # K for this KV head
            pl.BlockSpec((bk, head_dim),
                         lambda kvh, qi, ki: (ki, kvh)),
            # V sliced straight out of the fused qkv activation
            pl.BlockSpec((bk, head_dim),
                         lambda kvh, qi, ki: (ki, num_heads + num_kv_heads + kvh)),
        ],
        out_specs=pl.BlockSpec((bq, group * head_dim),
                               lambda kvh, qi, ki: (qi, kvh)),
        scratch_shapes=[
            pltpu.VMEM((group, bq, 1), jnp.float32),          # m
            pltpu.VMEM((group, bq, 1), jnp.float32),          # l
            pltpu.VMEM((group, bq, head_dim), jnp.float32),   # acc
        ],
        compiler_params=pltpu.CompilerParams(
            dimension_semantics=("parallel", "parallel", "arbitrary"),
            vmem_limit_bytes=VMEM_LIMIT),
        cost_estimate=cost,
    )(q_rot, k_rot, qkv)


# --------------------------------------------------------------------------
# Module wrapper (parameter setup + tiny cos/sin precompute = glue,
# all hot-path compute runs in Pallas kernels).
# --------------------------------------------------------------------------
class LlamaAttentionPallas:
    def __init__(self, hidden_size, num_heads, num_kv_heads, head_dim=None,
                 rope_theta=10000.0, max_position_embeddings=8192, *, key):
        # tp_size == 1 (single device)
        self.hidden_size = hidden_size
        self.num_heads = num_heads
        self.num_kv_heads = num_kv_heads
        self.head_dim = head_dim if head_dim is not None else hidden_size // num_heads
        self.q_size = self.num_heads * self.head_dim
        self.kv_size = self.num_kv_heads * self.head_dim
        self.scaling = self.head_dim ** (-0.5)
        self.rope_theta = rope_theta
        self.max_position_embeddings = max_position_embeddings

        k1, k2 = jax.random.split(key)
        qkv_out = self.q_size + 2 * self.kv_size
        # QKVParallelLinear weight (bias=False): [H, q_size + 2*kv_size], bf16 for MXU
        self.w_qkv = (jax.random.normal(k1, (hidden_size, qkv_out), jnp.float32)
                      * (1.0 / math.sqrt(hidden_size))).astype(jnp.bfloat16)
        # RowParallelLinear o_proj weight (bias=False): [num_heads*head_dim, H]
        self.w_o = (jax.random.normal(k2, (self.q_size, hidden_size), jnp.float32)
                    * (1.0 / math.sqrt(self.q_size))).astype(jnp.bfloat16)

    def rope_cos_sin(self, positions):
        # cos duplicated over both halves; sin sign-flipped on the first half so
        # that x*cos + roll(x, D/2)*sin == neox rotation.  Shapes [S, D] (lane-dense).
        D = self.head_dim
        inv_freq = 1.0 / (self.rope_theta **
                          (jnp.arange(0, D, 2, dtype=jnp.float32) / D))
        freqs = positions.astype(jnp.float32)[:, None] * inv_freq[None, :]  # [S, D/2]
        cos = jnp.cos(freqs)
        sin = jnp.sin(freqs)
        cos_full = jnp.concatenate([cos, cos], axis=-1)
        sin_sgn = jnp.concatenate([-sin, sin], axis=-1)
        return cos_full, sin_sgn

    def __call__(self, positions, hidden_states):
        S, H = hidden_states.shape
        assert H == self.hidden_size
        x = hidden_states.astype(jnp.bfloat16)

        qkv = matmul(x, self.w_qkv)                    # [S, q_size + 2*kv_size] bf16
        cos_full, sin_sgn = self.rope_cos_sin(positions)

        # RoPE once per head; softmax scale folded into q.
        q_rot = apply_rope(qkv, cos_full, sin_sgn, n_heads=self.num_heads,
                           head_offset=0, head_dim=self.head_dim,
                           scale=self.scaling)
        k_rot = apply_rope(qkv, cos_full, sin_sgn, n_heads=self.num_kv_heads,
                           head_offset=self.num_heads, head_dim=self.head_dim,
                           scale=1.0)

        attn_out = flash_attention(q_rot, k_rot, qkv,
                                   num_heads=self.num_heads,
                                   num_kv_heads=self.num_kv_heads,
                                   head_dim=self.head_dim)   # [S, q_size] bf16
        return matmul(attn_out, self.w_o)                    # [S, H] bf16


# --------------------------------------------------------------------------
# Pure-JAX reference (mirrors the bf16 stage boundaries) for verification.
# --------------------------------------------------------------------------
def reference(positions, hidden_states, mod):
    f32, bf16 = jnp.float32, jnp.bfloat16
    S = hidden_states.shape[0]
    D = mod.head_dim
    x = hidden_states.astype(bf16)
    qkv = jnp.dot(x.astype(f32), mod.w_qkv.astype(f32)).astype(bf16)
    q = qkv[:, :mod.q_size]
    k = qkv[:, mod.q_size:mod.q_size + mod.kv_size]
    v = qkv[:, mod.q_size + mod.kv_size:]
    cos_full, sin_sgn = mod.rope_cos_sin(positions)

    def rope(t, n, scale):
        t = t.reshape(S, n, D).astype(f32)
        rolled = jnp.roll(t, D // 2, axis=-1)
        return ((t * cos_full[:, None, :] + rolled * sin_sgn[:, None, :]) * scale
                ).astype(bf16)

    q = rope(q, mod.num_heads, mod.scaling)          # [S, nH, D]
    k = rope(k, mod.num_kv_heads, 1.0)               # [S, nKV, D]
    v = v.reshape(S, mod.num_kv_heads, D)
    group = mod.num_heads // mod.num_kv_heads
    k = jnp.repeat(k, group, axis=1)
    v = jnp.repeat(v, group, axis=1)

    s = jnp.einsum('qhd,khd->hqk', q.astype(f32), k.astype(f32))
    mask = jnp.tril(jnp.ones((S, S), dtype=bool))
    s = jnp.where(mask[None], s, -1e30)
    p = jax.nn.softmax(s, axis=-1).astype(bf16).astype(f32)
    o = jnp.einsum('hqk,khd->qhd', p, v.astype(f32)).astype(bf16)
    o = o.reshape(S, mod.q_size)
    return jnp.dot(o.astype(f32), mod.w_o.astype(f32)).astype(bf16)


if __name__ == "__main__":
    key = jax.random.PRNGKey(0)
    k_param, k_x = jax.random.split(key)

    S, H = 128, 256
    num_heads, num_kv_heads = 2, 1     # head_dim = 128, GQA group = 2

    mod = LlamaAttentionPallas(hidden_size=H, num_heads=num_heads,
                               num_kv_heads=num_kv_heads, key=k_param)

    hidden_states = jax.random.normal(k_x, (S, H), jnp.float32).astype(jnp.bfloat16)
    positions = jnp.arange(S, dtype=jnp.int32)

    out = jax.block_until_ready(mod(positions, hidden_states))
    ref = reference(positions, hidden_states, mod)

    assert out.shape == (S, H)
    diff = jnp.max(jnp.abs(out.astype(jnp.float32) - ref.astype(jnp.float32)))
    assert jnp.allclose(out.astype(jnp.float32), ref.astype(jnp.float32),
                        atol=5e-2, rtol=5e-2), f"mismatch: max abs diff {diff}"

    print("KERNEL_OK")
</pallas_src>

<mosaic_0001>
module attributes {stable_mosaic.version = 11 : i64} {
  func.func @_matmul_kernel(%arg0: i32, %arg1: i32, %arg2: i32, %arg3: memref<128x256xbf16, #tpu.memory_space<vmem>>, %arg4: memref<256x256xbf16, #tpu.memory_space<vmem>>, %arg5: memref<128x256xbf16, #tpu.memory_space<vmem>>, %arg6: memref<128x256xf32, #tpu.memory_space<vmem>>) attributes {dimension_semantics = [#tpu.dimension_semantics<parallel>, #tpu.dimension_semantics<parallel>, #tpu.dimension_semantics<arbitrary>], iteration_bounds = array<i64: 1, 2, 1>, scalar_prefetch = 0 : i64, scratch_operands = 1 : i64, tpu.core_type = #tpu.core_type<tc>, window_params = [{transform_indices = @transform_0, window_bounds = array<i64: 128, 256>}, {transform_indices = @transform_1, window_bounds = array<i64: 256, 256>}, {transform_indices = @transform_2, window_bounds = array<i64: 128, 256>}]} {
    %c0_i32 = arith.constant 0 : i32
    %0 = arith.cmpi eq, %arg2, %c0_i32 : i32
    %1 = arith.extui %0 : i1 to i32
    %c0_i32_0 = arith.constant 0 : i32
    %2 = arith.cmpi ne, %1, %c0_i32_0 : i32
    scf.if %2 {
      %cst_10 = arith.constant 0.000000e+00 : f32
      %12 = vector.broadcast %cst_10 : f32 to vector<128x256xf32>
      %c0_11 = arith.constant 0 : index
      %c0_12 = arith.constant 0 : index
      %13 = vector.load %arg6[%c0_11, %c0_12] : memref<128x256xf32, #tpu.memory_space<vmem>>, vector<128x256xf32>
      tpu.vector_store %arg6[%c0_11, %c0_12], %12 {strides = array<i32>} : memref<128x256xf32, #tpu.memory_space<vmem>>, vector<128x256xf32>,
    } else {
    }
    %c0 = arith.constant 0 : index
    %c0_1 = arith.constant 0 : index
    %3 = vector.load %arg6[%c0, %c0_1] : memref<128x256xf32, #tpu.memory_space<vmem>>, vector<128x256xf32>
    %c0_2 = arith.constant 0 : index
    %c0_3 = arith.constant 0 : index
    %4 = vector.load %arg3[%c0_2, %c0_3] : memref<128x256xbf16, #tpu.memory_space<vmem>>, vector<128x256xbf16>
    %c0_4 = arith.constant 0 : index
    %c0_5 = arith.constant 0 : index
    %5 = vector.load %arg4[%c0_4, %c0_5] : memref<256x256xbf16, #tpu.memory_space<vmem>>, vector<256x256xbf16>
    %cst = arith.constant dense<0.000000e+00> : vector<128x256xf32>
    %6 = tpu.matmul %4, %5, %cst {dimension_numbers = #tpu.dot_dimension_numbers<[1], [0], [0], [1], [0, 0, 1, 1], [], []>} : vector<128x256xbf16>, vector<256x256xbf16>, vector<128x256xf32> -> vector<128x256xf32>
    %7 = arith.addf %3, %6 : vector<128x256xf32>
    %c0_6 = arith.constant 0 : index
    %c0_7 = arith.constant 0 : index
    %8 = vector.load %arg6[%c0_6, %c0_7] : memref<128x256xf32, #tpu.memory_space<vmem>>, vector<128x256xf32>
    tpu.vector_store %arg6[%c0_6, %c0_7], %7 {strides = array<i32>} : memref<128x256xf32, #tpu.memory_space<vmem>>, vector<128x256xf32>,
    %c0_i32_8 = arith.constant 0 : i32
    %9 = arith.cmpi eq, %arg2, %c0_i32_8 : i32
    %10 = arith.extui %9 : i1 to i32
    %c0_i32_9 = arith.constant 0 : i32
    %11 = arith.cmpi ne, %10, %c0_i32_9 : i32
    scf.if %11 {
      %c0_10 = arith.constant 0 : index
      %c0_11 = arith.constant 0 : index
      %12 = vector.load %arg6[%c0_10, %c0_11] : memref<128x256xf32, #tpu.memory_space<vmem>>, vector<128x256xf32>
      %13 = arith.truncf %12 : vector<128x256xf32> to vector<128x256xbf16>
      %c0_12 = arith.constant 0 : index
      %c0_13 = arith.constant 0 : index
      %14 = vector.load %arg5[%c0_12, %c0_13] : memref<128x256xbf16, #tpu.memory_space<vmem>>, vector<128x256xbf16>
      tpu.vector_store %arg5[%c0_12, %c0_13], %13 {strides = array<i32>} : memref<128x256xbf16, #tpu.memory_space<vmem>>, vector<128x256xbf16>,
    } else {
    }
    return
  }
  func.func @transform_0(%arg0: i32, %arg1: i32, %arg2: i32) -> (i32, i32) {
    %c0_i32 = arith.constant 0 : i32
    return %arg0, %arg2 : i32, i32
  }
  func.func @transform_1(%arg0: i32, %arg1: i32, %arg2: i32) -> (i32, i32) {
    %c0_i32 = arith.constant 0 : i32
    return %arg2, %arg1 : i32, i32
  }
  func.func @transform_2(%arg0: i32, %arg1: i32, %arg2: i32) -> (i32, i32) {
    %c0_i32 = arith.constant 0 : i32
    return %arg0, %arg1 : i32, i32
  }
}

</mosaic_0001>

<llo_original>
// kernel: tpu_custom_call.1
$region0: #{tpu_custom_call.1}
  #allocation0 [shape = 'u32[]', space=smem, size = 0x4, offset = 0x4, fixed_abs, tag = 'smem constant byte address 0x4 - core index']
  #allocation1 [shape = 'u32[72,128]{1,0:T(1,128)}', space=vmem, size = 0x9000, scoped, tag = 'internal scratch']
  #allocation2 [shape = 'f32[128,256]{1,0:T(8,128)}', space=vmem, size = 0x20000, scoped, tag = 'scratch operand']
  %s0 = inlined_call_operand.hbm [shape: bf16[128,256], index: 0, kind: input, shape index: {}]
  %s1 = inlined_call_operand.hbm [shape: bf16[256,512], index: 1, kind: input, shape index: {}]
  %s2 = inlined_call_operand.hbm [shape: bf16[128,512], index: 2, kind: output, shape index: {}]
  %s3 = sld [smem:[#allocation0]]
  $region57: #{tpu_custom_call.1} parent=0
    _
  %s5 = ssub.s32 1, %s3
  %s6 = scalar_select 0, %s5, %s3
  $region1: #{tpu_custom_call.1} parent=0
    #allocation3 [shape = 'u8[65536]{0}', space=vmem, size = 0x10000, scoped, tag = 'input window, operand 0, single buffered']
    #allocation4 [shape = 's32[2]{0}', space=sflag, size = 0x8, scoped, tag = 'scoped memory for tpu_custom_call.1']
    #allocation5 [shape = 's32[2]{0}', space=sflag, size = 0x8, scoped, tag = 'scoped memory for tpu_custom_call.1']
    #allocation6 [shape = 'u8[262144]{0}', space=vmem, size = 0x40000, scoped, tag = 'input window, operand 1']
    #allocation7 [shape = 's32[2]{0}', space=sflag, size = 0x8, scoped, tag = 'scoped memory for tpu_custom_call.1']
    #allocation8 [shape = 'u8[131072]{0}', space=vmem, size = 0x20000, scoped, tag = 'output window, operand 0']
    %7 = vsyncpa [#allocation4], 0
    %8 = vsyncpa [#allocation7], 0
    %s9 = scalar_lea.sflag [#allocation7], 1
    %10 = vsyncpa %s9, 0
    %11 = vsyncpa [#allocation5], 0
    %s12 = scalar_lea.sflag [#allocation5], 1
    %13 = vsyncpa %s12, 0
    loop: start=0, step=1, limit=4
    $region2: #{tpu_custom_call.1} parent=1 // loop_pre_header
      _
    $region3: #{tpu_custom_call.1} parent=1 // loop_header
      %s15 = sphi 0, %s19
      %p16 = scmp.ge.s32.totalorder %s15, 4
      %s22 = sphi 0, %s41
      %s23 = sphi 0, %s37
      %s24 = sphi 0, %s33
      %s25 = sphi 0, %s22
      %s26 = sphi 0, %s23
      %s27 = sphi 0, %s24
      %s28 = sphi 0, %s25
      %s29 = sphi 0, %s26
      %s30 = sphi 0, %s27
      %s46 = sphi 0, %s48
      %s49 = sphi 0, %s46
      %s50 = sphi 0, %s49
      %s66 = sphi 0, %s50
      %s74 = sphi 0, %s76
      %s77 = sphi 0, %s74
      %s78 = sphi 0, %s77
      %s94 = sphi 0, %s78
      %s102 = sphi 0, %s104
      %s105 = sphi 0, %s102
      %s106 = sphi 0, %s105
      %s122 = sphi 0, %s106
    $region4: #{tpu_custom_call.1} parent=1 // loop_header_branch
      %18 = sbr.rel (%p16) target = $region8
    $region5: #{tpu_custom_call.1} parent=1 // loop_body
      %s20 = ssub.s32 %s15, 1
      %s21 = ssub.s32 %s15, 2
      %s31 = sadd.s32 1, %s24
      %p32 = scmp.ge.s32.totalorder %s31, 1
      %s33 = scalar_select %p32, 0, %s31
      %s34 = sadd.s32 1, %s23
      %s35 = scalar_select %p32, %s34, %s23
      %p36 = scmp.ge.s32.totalorder %s35, 2
      %s37 = scalar_select %p36, 0, %s35
      %s38 = sadd.s32 1, %s22
      %s39 = scalar_select %p36, %s38, %s22
      %p40 = scmp.ge.s32.totalorder %s39, 1
      %s41 = scalar_select %p40, 0, %s39
      %s42 = ssub.s32 %s22, %s41
      %s43 = ssub.s32 %s24, %s33
      %s44 = sor.u32 %s42, %s43
      %p45 = scmp.eq.s32.totalorder %s44, 0
      %s47 = sadd.s32 %s46, 1
      %s48 = scalar_select %p45, %s46, %s47
      %p51 = pneg %p45
      %p52 = scmp.eq.s32.totalorder %s15, 1
      %p53 = por %p51, %p52
      %p54 = scmp.ne.s32.totalorder %s46, %s49
      %p55 = scmp.eq.s32.totalorder %s15, 0
      %p56 = por %p54, %p55
      %p57 = scmp.ne.s32.totalorder %s46, %s49
      %p58 = scmp.eq.s32.totalorder %s20, 1
      %p59 = por %p57, %p58
      %p60 = scmp.ne.s32.totalorder %s49, %s50
      %p61 = scmp.eq.s32.totalorder %s20, 0
      %p62 = por %p60, %p61
      %p63 = scmp.ne.s32.totalorder %s49, %s50
      %p64 = scmp.eq.s32.totalorder %s21, 1
      %p65 = por %p63, %p64
      %p67 = scmp.ne.s32.totalorder %s50, %s66
      %p68 = scmp.eq.s32.totalorder %s21, 0
      %p69 = por %p67, %p68
      %s70 = ssub.s32 %s24, %s33
      %s71 = ssub.s32 %s23, %s37
      %s72 = sor.u32 %s70, %s71
      %p73 = scmp.eq.s32.totalorder %s72, 0
      %s75 = sadd.s32 %s74, 1
      %s76 = scalar_select %p73, %s74, %s75
      %p79 = pneg %p73
      %p80 = scmp.eq.s32.totalorder %s15, 1
      %p81 = por %p79, %p80
      %p82 = scmp.ne.s32.totalorder %s74, %s77
      %p83 = scmp.eq.s32.totalorder %s15, 0
      %p84 = por %p82, %p83
      %p85 = scmp.ne.s32.totalorder %s74, %s77
      %p86 = scmp.eq.s32.totalorder %s20, 1
      %p87 = por %p85, %p86
      %p88 = scmp.ne.s32.totalorder %s77, %s78
      %p89 = scmp.eq.s32.totalorder %s20, 0
      %p90 = por %p88, %p89
      %p91 = scmp.ne.s32.totalorder %s77, %s78
      %p92 = scmp.eq.s32.totalorder %s21, 1
      %p93 = por %p91, %p92
      %p95 = scmp.ne.s32.totalorder %s78, %s94
      %p96 = scmp.eq.s32.totalorder %s21, 0
      %p97 = por %p95, %p96
      %s98 = ssub.s32 %s22, %s41
      %s99 = ssub.s32 %s23, %s37
      %s100 = sor.u32 %s98, %s99
      %p101 = scmp.eq.s32.totalorder %s100, 0
      %s103 = sadd.s32 %s102, 1
      %s104 = scalar_select %p101, %s102, %s103
      %p107 = pneg %p101
      %p108 = scmp.eq.s32.totalorder %s15, 1
      %p109 = por %p107, %p108
      %p110 = scmp.ne.s32.totalorder %s102, %s105
      %p111 = scmp.eq.s32.totalorder %s15, 0
      %p112 = por %p110, %p111
      %p113 = scmp.ne.s32.totalorder %s102, %s105
      %p114 = scmp.eq.s32.totalorder %s20, 1
      %p115 = por %p113, %p114
      %p116 = scmp.ne.s32.totalorder %s105, %s106
      %p117 = scmp.eq.s32.totalorder %s20, 0
      %p118 = por %p116, %p117
      %p119 = scmp.ne.s32.totalorder %s105, %s106
      %p120 = scmp.eq.s32.totalorder %s21, 1
      %p121 = por %p119, %p120
      %p123 = scmp.ne.s32.totalorder %s106, %s122
      %p124 = scmp.eq.s32.totalorder %s21, 0
      %p125 = por %p123, %p124
      %p126 = scmp.le.s32.totalorder 1, %s15
      %p127 = scmp.lt.s32.totalorder %s15, 3
      %p128 = pnand %p126, %p127
      %p129 = pneg %p128
      // Predicated region
      $region9: #{tpu_custom_call.1} parent=5 // pred_check
        _
      $region10: #{tpu_custom_call.1} parent=5 // pred_check_branch
        %131 = sbr.rel (%p128) target = $region12
      $region11: #{tpu_custom_call.1} parent=5 // pred_region
        %s132 = ssub.s32 %s15, 1
        // Predicated region
        $region13: #{tpu_custom_call.1} parent=11 // pred_check
          %p133 = pneg %p62
        $region14: #{tpu_custom_call.1} parent=11 // pred_check_branch
          %135 = sbr.rel (%p133) target = $region16
        $region15: #{tpu_custom_call.1} parent=11 // pred_region
          %s136 = smul.u32 16, %s25
          %s137 = smul.u32 2, %s27
          %139 = vsyncadd [#allocation4], 0
          %s140 = smul.addr %s136, 2
          %s141 = sadd.s32 %s137, %s140
          %s142 = smul.addr %s141, 4
          %s143 = scalar_lea.hbm %s0, %s142
          %s144 = sshll.u32 %s143, 4
          %s145 = int_to_ptr.hbm [resolvable:$true] %s144
          %s146 = sshll.u32 [#allocation3], 4
          %s147 = int_to_ptr.vmem [resolvable:$true] %s146
          %152 = dma.hbm_to_vmem [thread:$0]  %s145, 2048, %s147, [#allocation4], 128, 128, 8
        $region16: #{tpu_custom_call.1} parent=11 // pred_fallthru
          _
      $region12: #{tpu_custom_call.1} parent=5 // pred_fallthru
        _
      %p153 = scmp.lt.s32.totalorder %s15, 2
      // Predicated region
      $region17: #{tpu_custom_call.1} parent=5 // pred_check
        %p154 = pneg %p153
      $region18: #{tpu_custom_call.1} parent=5 // pred_check_branch
        %156 = sbr.rel (%p154) target = $region20
      $region19: #{tpu_custom_call.1} parent=5 // pred_region
        // Predicated region
        $region21: #{tpu_custom_call.1} parent=19 // pred_check
          %p157 = pneg %p84
        $region22: #{tpu_custom_call.1} parent=19 // pred_check_branch
          %159 = sbr.rel (%p157) target = $region24
        $region23: #{tpu_custom_call.1} parent=19 // pred_region
          %s160 = sand.u32 %s74, 1
          %s161 = scalar_lea.sflag [#allocation7], %s160
          %s162 = sand.u32 %s74, 1
          %s163 = smul.addr %s162, 256
          %s164 = scalar_lea.vmem [#allocation6], %s163
          %s165 = smul.u32 32, %s24
          %s166 = smul.u32 2, %s23
          %168 = vsyncadd %s161, 0
          %s169 = smul.addr %s165, 4
          %s170 = sadd.s32 %s166, %s169
          %s171 = smul.addr %s170, 4
          %s172 = scalar_lea.hbm %s1, %s171
          %s173 = sshll.u32 %s172, 4
          %s174 = int_to_ptr.hbm [resolvable:$true] %s173
          %s175 = sshll.u32 %s164, 4
          %s176 = int_to_ptr.vmem [resolvable:$true] %s175
          %181 = dma.hbm_to_vmem [thread:$0]  %s174, 4096, %s176, %s161, 256, 128, 8
        $region24: #{tpu_custom_call.1} parent=19 // pred_fallthru
          _
      $region20: #{tpu_custom_call.1} parent=5 // pred_fallthru
        _
      %p182 = scmp.le.s32.totalorder 1, %s15
      %p183 = scmp.lt.s32.totalorder %s15, 3
      %p184 = pnand %p182, %p183
      %p185 = pneg %p184
      // Predicated region
      $region25: #{tpu_custom_call.1} parent=5 // pred_check
        _
      $region26: #{tpu_custom_call.1} parent=5 // pred_check_branch
        %187 = sbr.rel (%p184) target = $region28
      $region27: #{tpu_custom_call.1} parent=5 // pred_region
        %s188 = ssub.s32 %s15, 1
        // Predicated region
        $region29: #{tpu_custom_call.1} parent=27 // pred_check
          %p189 = pneg %p62
        $region30: #{tpu_custom_call.1} parent=27 // pred_check_branch
          %191 = sbr.rel (%p189) target = $region32
        $region31: #{tpu_custom_call.1} parent=27 // pred_region
          %193 = dma.done [#allocation4], 2048
        $region32: #{tpu_custom_call.1} parent=27 // pred_fallthru
          _
        %s194 = sand.u32 %s77, 1
        %s195 = scalar_lea.sflag [#allocation7], %s194
        %s196 = sand.u32 %s77, 1
        %s197 = smul.addr %s196, 256
        %s198 = scalar_lea.vmem [#allocation6], %s197
        // Predicated region
        $region33: #{tpu_custom_call.1} parent=27 // pred_check
          %p199 = pneg %p90
        $region34: #{tpu_custom_call.1} parent=27 // pred_check_branch
          %201 = sbr.rel (%p199) target = $region36
        $region35: #{tpu_custom_call.1} parent=27 // pred_region
          %203 = dma.done %s195, 4096
        $region36: #{tpu_custom_call.1} parent=27 // pred_fallthru
          _
        %p204 = pneg %p62
        %p205 = pneg %p59
        %s206 = sand.u32 %s77, 1
        %s207 = scalar_lea.sflag [#allocation7], %s206
        %s208 = sand.u32 %s77, 1
        %s209 = smul.addr %s208, 256
        %s210 = scalar_lea.vmem [#allocation6], %s209
        %p211 = pneg %p90
        %p212 = pneg %p87
        %p213 = pneg %p118
        %p214 = pneg %p115
        %s215 = sand.u32 %s105, 1
        %s216 = scalar_lea.sflag [#allocation5], %s215
        %s217 = sand.u32 %s105, 1
        %s218 = smul.addr %s217, 128
        %s219 = scalar_lea.vmem [#allocation8], %s218
        %s220 = smul.u32 16, %s25
        %s221 = smul.u32 2, %s27
        %s222 = smul.u32 32, %s27
        %s223 = smul.u32 2, %s26
        %s224 = smul.u32 16, %s25
        %s225 = smul.u32 2, %s26
        %p226 = scmp.eq.s32.totalorder %s27, 0
        // Predicated region
        $region37: #{tpu_custom_call.1} parent=27 // pred_check
          %p227 = pneg %p226
        $region38: #{tpu_custom_call.1} parent=27 // pred_check_branch
          %229 = sbr.rel (%p227) target = $region40
        $region39: #{tpu_custom_call.1} parent=27 // pred_region
          %230 = vst [vmem:[#allocation2] sm:$0xff] 0.0
          %231 = vst [vmem:[#allocation2 + $0x8] sm:$0xff] 0.0
          %232 = vst [vmem:[#allocation2 + $0x10] sm:$0xff] 0.0
          %233 = vst [vmem:[#allocation2 + $0x18] sm:$0xff] 0.0
          %234 = vst [vmem:[#allocation2 + $0x20] sm:$0xff] 0.0
          %235 = vst [vmem:[#allocation2 + $0x28] sm:$0xff] 0.0
          %236 = vst [vmem:[#allocation2 + $0x30] sm:$0xff] 0.0
          %237 = vst [vmem:[#allocation2 + $0x38] sm:$0xff] 0.0
          %238 = vst [vmem:[#allocation2 + $0x40] sm:$0xff] 0.0
          %239 = vst [vmem:[#allocation2 + $0x48] sm:$0xff] 0.0
          %240 = vst [vmem:[#allocation2 + $0x50] sm:$0xff] 0.0
          %241 = vst [vmem:[#allocation2 + $0x58] sm:$0xff] 0.0
          %242 = vst [vmem:[#allocation2 + $0x60] sm:$0xff] 0.0
          %243 = vst [vmem:[#allocation2 + $0x68] sm:$0xff] 0.0
          %244 = vst [vmem:[#allocation2 + $0x70] sm:$0xff] 0.0
          %245 = vst [vmem:[#allocation2 + $0x78] sm:$0xff] 0.0
          %246 = vst [vmem:[#allocation2 + $0x80] sm:$0xff] 0.0
          %247 = vst [vmem:[#allocation2 + $0x88] sm:$0xff] 0.0
          %248 = vst [vmem:[#allocation2 + $0x90] sm:$0xff] 0.0
          %249 = vst [vmem:[#allocation2 + $0x98] sm:$0xff] 0.0
          %250 = vst [vmem:[#allocation2 + $0xa0] sm:$0xff] 0.0
          %251 = vst [vmem:[#allocation2 + $0xa8] sm:$0xff] 0.0
          %252 = vst [vmem:[#allocation2 + $0xb0] sm:$0xff] 0.0
          %253 = vst [vmem:[#allocation2 + $0xb8] sm:$0xff] 0.0
          %254 = vst [vmem:[#allocation2 + $0xc0] sm:$0xff] 0.0
          %255 = vst [vmem:[#allocation2 + $0xc8] sm:$0xff] 0.0
          %256 = vst [vmem:[#allocation2 + $0xd0] sm:$0xff] 0.0
          %257 = vst [vmem:[#allocation2 + $0xd8] sm:$0xff] 0.0
          %258 = vst [vmem:[#allocation2 + $0xe0] sm:$0xff] 0.0
          %259 = vst [vmem:[#allocation2 + $0xe8] sm:$0xff] 0.0
          %260 = vst [vmem:[#allocation2 + $0xf0] sm:$0xff] 0.0
          %261 = vst [vmem:[#allocation2 + $0xf8] sm:$0xff] 0.0
        $region40: #{tpu_custom_call.1} parent=27 // pred_fallthru
          _
        %v262 = vld [vmem:[#allocation2] sm:$0xff]
        %v263 = vld [vmem:[#allocation2 + $0x8] sm:$0xff]
        %v264 = vld [vmem:[#allocation2 + $0x10] sm:$0xff]
        %v265 = vld [vmem:[#allocation2 + $0x18] sm:$0xff]
        %v266 = vld [vmem:[#allocation2 + $0x20] sm:$0xff]
        %v267 = vld [vmem:[#allocation2 + $0x28] sm:$0xff]
        %v268 = vld [vmem:[#allocation2 + $0x30] sm:$0xff]
        %v269 = vld [vmem:[#allocation2 + $0x38] sm:$0xff]
        %v270 = vld [vmem:[#allocation2 + $0x40] sm:$0xff]
        %v271 = vld [vmem:[#allocation2 + $0x48] sm:$0xff]
        %v272 = vld [vmem:[#allocation2 + $0x50] sm:$0xff]
        %v273 = vld [vmem:[#allocation2 + $0x58] sm:$0xff]
        %v274 = vld [vmem:[#allocation2 + $0x60] sm:$0xff]
        %v275 = vld [vmem:[#allocation2 + $0x68] sm:$0xff]
        %v276 = vld [vmem:[#allocation2 + $0x70] sm:$0xff]
        %v277 = vld [vmem:[#allocation2 + $0x78] sm:$0xff]
        %v278 = vld [vmem:[#allocation2 + $0x80] sm:$0xff]
        %v279 = vld [vmem:[#allocation2 + $0x88] sm:$0xff]
        %v280 = vld [vmem:[#allocation2 + $0x90] sm:$0xff]
        %v281 = vld [vmem:[#allocation2 + $0x98] sm:$0xff]
        %v282 = vld [vmem:[#allocation2 + $0xa0] sm:$0xff]
        %v283 = vld [vmem:[#allocation2 + $0xa8] sm:$0xff]
        %v284 = vld [vmem:[#allocation2 + $0xb0] sm:$0xff]
        %v285 = vld [vmem:[#allocation2 + $0xb8] sm:$0xff]
        %v286 = vld [vmem:[#allocation2 + $0xc0] sm:$0xff]
        %v287 = vld [vmem:[#allocation2 + $0xc8] sm:$0xff]
        %v288 = vld [vmem:[#allocation2 + $0xd0] sm:$0xff]
        %v289 = vld [vmem:[#allocation2 + $0xd8] sm:$0xff]
        %v290 = vld [vmem:[#allocation2 + $0xe0] sm:$0xff]
        %v291 = vld [vmem:[#allocation2 + $0xe8] sm:$0xff]
        %v292 = vld [vmem:[#allocation2 + $0xf0] sm:$0xff]
        %v293 = vld [vmem:[#allocation2 + $0xf8] sm:$0xff]
        %v294 = vld [vmem:[#allocation3] sm:$0xff]
        %v295 = vld [vmem:[#allocation3 + $0x8] sm:$0xff]
        %v296 = vld [vmem:[#allocation3 + $0x10] sm:$0xff]
        %v297 = vld [vmem:[#allocation3 + $0x18] sm:$0xff]
        %v298 = vld [vmem:[#allocation3 + $0x20] sm:$0xff]
        %v299 = vld [vmem:[#allocation3 + $0x28] sm:$0xff]
        %v300 = vld [vmem:[#allocation3 + $0x30] sm:$0xff]
        %v301 = vld [vmem:[#allocation3 + $0x38] sm:$0xff]
        %v302 = vld [vmem:[#allocation3 + $0x40] sm:$0xff]
        %v303 = vld [vmem:[#allocation3 + $0x48] sm:$0xff]
        %v304 = vld [vmem:[#allocation3 + $0x50] sm:$0xff]
        %v305 = vld [vmem:[#allocation3 + $0x58] sm:$0xff]
        %v306 = vld [vmem:[#allocation3 + $0x60] sm:$0xff]
        %v307 = vld [vmem:[#allocation3 + $0x68] sm:$0xff]
        %v308 = vld [vmem:[#allocation3 + $0x70] sm:$0xff]
        %v309 = vld [vmem:[#allocation3 + $0x78] sm:$0xff]
        %v310 = vld [vmem:[%s198] sm:$0xff]
        %v311 = vld [vmem:[%s198 + $0x8] sm:$0xff]
        %v312 = vld [vmem:[%s198 + $0x10] sm:$0xff]
        %v313 = vld [vmem:[%s198 + $0x18] sm:$0xff]
        %v314 = vld [vmem:[%s198 + $0x20] sm:$0xff]
        %v315 = vld [vmem:[%s198 + $0x28] sm:$0xff]
        %v316 = vld [vmem:[%s198 + $0x30] sm:$0xff]
        %v317 = vld [vmem:[%s198 + $0x38] sm:$0xff]
        %v318 = vld [vmem:[%s198 + $0x40] sm:$0xff]
        %v319 = vld [vmem:[%s198 + $0x48] sm:$0xff]
        %v320 = vld [vmem:[%s198 + $0x50] sm:$0xff]
        %v321 = vld [vmem:[%s198 + $0x58] sm:$0xff]
        %v322 = vld [vmem:[%s198 + $0x60] sm:$0xff]
        %v323 = vld [vmem:[%s198 + $0x68] sm:$0xff]
        %v324 = vld [vmem:[%s198 + $0x70] sm:$0xff]
        %v325 = vld [vmem:[%s198 + $0x78] sm:$0xff]
        %v326 = vld [vmem:[%s198 + $0x80] sm:$0xff]
        %v327 = vld [vmem:[%s198 + $0x88] sm:$0xff]
        %v328 = vld [vmem:[%s198 + $0x90] sm:$0xff]
        %v329 = vld [vmem:[%s198 + $0x98] sm:$0xff]
        %v330 = vld [vmem:[%s198 + $0xa0] sm:$0xff]
        %v331 = vld [vmem:[%s198 + $0xa8] sm:$0xff]
        %v332 = vld [vmem:[%s198 + $0xb0] sm:$0xff]
        %v333 = vld [vmem:[%s198 + $0xb8] sm:$0xff]
        %v334 = vld [vmem:[%s198 + $0xc0] sm:$0xff]
        %v335 = vld [vmem:[%s198 + $0xc8] sm:$0xff]
        %v336 = vld [vmem:[%s198 + $0xd0] sm:$0xff]
        %v337 = vld [vmem:[%s198 + $0xd8] sm:$0xff]
        %v338 = vld [vmem:[%s198 + $0xe0] sm:$0xff]
        %v339 = vld [vmem:[%s198 + $0xe8] sm:$0xff]
        %v340 = vld [vmem:[%s198 + $0xf0] sm:$0xff]
        %v341 = vld [vmem:[%s198 + $0xf8] sm:$0xff]
        %v358 = vunpack.c.l.b16 %v294
        %v359 = vunpack.c.h.b16 %v294
        %v360 = vunpack.c.l.b16 %v295
        %v361 = vunpack.c.h.b16 %v295
        %v362 = vunpack.c.l.b16 %v296
        %v363 = vunpack.c.h.b16 %v296
        %v364 = vunpack.c.l.b16 %v297
        %v365 = vunpack.c.h.b16 %v297
        %v366 = vunpack.c.l.b16 %v298
        %v367 = vunpack.c.h.b16 %v298
        %v368 = vunpack.c.l.b16 %v299
        %v369 = vunpack.c.h.b16 %v299
        %v370 = vunpack.c.l.b16 %v300
        %v371 = vunpack.c.h.b16 %v300
        %v372 = vunpack.c.l.b16 %v301
        %v373 = vunpack.c.h.b16 %v301
        %v374 = vunpack.c.l.b16 %v302
        %v375 = vunpack.c.h.b16 %v302
        %v376 = vunpack.c.l.b16 %v303
        %v377 = vunpack.c.h.b16 %v303
        %v378 = vunpack.c.l.b16 %v304
        %v379 = vunpack.c.h.b16 %v304
        %v380 = vunpack.c.l.b16 %v305
        %v381 = vunpack.c.h.b16 %v305
        %v382 = vunpack.c.l.b16 %v306
        %v383 = vunpack.c.h.b16 %v306
        %v384 = vunpack.c.l.b16 %v307
        %v385 = vunpack.c.h.b16 %v307
        %v386 = vunpack.c.l.b16 %v308
        %v387 = vunpack.c.h.b16 %v308
        %v388 = vunpack.c.l.b16 %v309
        %v389 = vunpack.c.h.b16 %v309
        %v390 = vpack.c.b16 %v360, %v358
        %v391 = vpack.c.b16 %v361, %v359
        %v392 = vpack.c.b16 %v364, %v362
        %v393 = vpack.c.b16 %v365, %v363
        %v394 = vpack.c.b16 %v368, %v366
        %v395 = vpack.c.b16 %v369, %v367
        %v396 = vpack.c.b16 %v372, %v370
        %v397 = vpack.c.b16 %v373, %v371
        %v398 = vpack.c.b16 %v376, %v374
        %v399 = vpack.c.b16 %v377, %v375
        %v400 = vpack.c.b16 %v380, %v378
        %v401 = vpack.c.b16 %v381, %v379
        %v402 = vpack.c.b16 %v384, %v382
        %v403 = vpack.c.b16 %v385, %v383
        %v404 = vpack.c.b16 %v388, %v386
        %v405 = vpack.c.b16 %v389, %v387
        %v454 = vunpack.c.l.b16 %v310
        %v455 = vunpack.c.h.b16 %v310
        %v456 = vunpack.c.l.b16 %v311
        %v457 = vunpack.c.h.b16 %v311
        %v458 = vunpack.c.l.b16 %v312
        %v459 = vunpack.c.h.b16 %v312
        %v460 = vunpack.c.l.b16 %v313
        %v461 = vunpack.c.h.b16 %v313
        %v462 = vunpack.c.l.b16 %v314
        %v463 = vunpack.c.h.b16 %v314
        %v464 = vunpack.c.l.b16 %v315
        %v465 = vunpack.c.h.b16 %v315
        %v466 = vunpack.c.l.b16 %v316
        %v467 = vunpack.c.h.b16 %v316
        %v468 = vunpack.c.l.b16 %v317
        %v469 = vunpack.c.h.b16 %v317
        %v470 = vunpack.c.l.b16 %v318
        %v471 = vunpack.c.h.b16 %v318
        %v472 = vunpack.c.l.b16 %v319
        %v473 = vunpack.c.h.b16 %v319
        %v474 = vunpack.c.l.b16 %v320
        %v475 = vunpack.c.h.b16 %v320
        %v476 = vunpack.c.l.b16 %v321
        %v477 = vunpack.c.h.b16 %v321
        %v478 = vunpack.c.l.b16 %v322
        %v479 = vunpack.c.h.b16 %v322
        %v480 = vunpack.c.l.b16 %v323
        %v481 = vunpack.c.h.b16 %v323
        %v482 = vunpack.c.l.b16 %v324
        %v483 = vunpack.c.h.b16 %v324
        %v484 = vunpack.c.l.b16 %v325
        %v485 = vunpack.c.h.b16 %v325
        %v486 = vunpack.c.l.b16 %v326
        %v487 = vunpack.c.h.b16 %v326
        %v488 = vunpack.c.l.b16 %v327
        %v489 = vunpack.c.h.b16 %v327
        %v490 = vunpack.c.l.b16 %v328
        %v491 = vunpack.c.h.b16 %v328
        %v492 = vunpack.c.l.b16 %v329
        %v493 = vunpack.c.h.b16 %v329
        %v494 = vunpack.c.l.b16 %v330
        %v495 = vunpack.c.h.b16 %v330
        %v496 = vunpack.c.l.b16 %v331
        %v497 = vunpack.c.h.b16 %v331
        %v498 = vunpack.c.l.b16 %v332
        %v499 = vunpack.c.h.b16 %v332
        %v500 = vunpack.c.l.b16 %v333
        %v501 = vunpack.c.h.b16 %v333
        %v502 = vunpack.c.l.b16 %v334
        %v503 = vunpack.c.h.b16 %v334
        %v504 = vunpack.c.l.b16 %v335
        %v505 = vunpack.c.h.b16 %v335
        %v506 = vunpack.c.l.b16 %v336
        %v507 = vunpack.c.h.b16 %v336
        %v508 = vunpack.c.l.b16 %v337
        %v509 = vunpack.c.h.b16 %v337
        %v510 = vunpack.c.l.b16 %v338
        %v511 = vunpack.c.h.b16 %v338
        %v512 = vunpack.c.l.b16 %v339
        %v513 = vunpack.c.h.b16 %v339
        %v514 = vunpack.c.l.b16 %v340
        %v515 = vunpack.c.h.b16 %v340
        %v516 = vunpack.c.l.b16 %v341
        %v517 = vunpack.c.h.b16 %v341
        %v518 = vpack.c.b16 %v456, %v454
        %v519 = vpack.c.b16 %v457, %v455
        %v520 = vpack.c.b16 %v460, %v458
        %v521 = vpack.c.b16 %v461, %v459
        %v522 = vpack.c.b16 %v464, %v462
        %v523 = vpack.c.b16 %v465, %v463
        %v524 = vpack.c.b16 %v468, %v466
        %v525 = vpack.c.b16 %v469, %v467
        %v526 = vpack.c.b16 %v472, %v470
        %v527 = vpack.c.b16 %v473, %v471
        %v528 = vpack.c.b16 %v476, %v474
        %v529 = vpack.c.b16 %v477, %v475
        %v530 = vpack.c.b16 %v480, %v478
        %v531 = vpack.c.b16 %v481, %v479
        %v532 = vpack.c.b16 %v484, %v482
        %v533 = vpack.c.b16 %v485, %v483
        %v534 = vpack.c.b16 %v488, %v486
        %v535 = vpack.c.b16 %v489, %v487
        %v536 = vpack.c.b16 %v492, %v490
        %v537 = vpack.c.b16 %v493, %v491
        %v538 = vpack.c.b16 %v496, %v494
        %v539 = vpack.c.b16 %v497, %v495
        %v540 = vpack.c.b16 %v500, %v498
        %v541 = vpack.c.b16 %v501, %v499
        %v542 = vpack.c.b16 %v504, %v502
        %v543 = vpack.c.b16 %v505, %v503
        %v544 = vpack.c.b16 %v508, %v506
        %v545 = vpack.c.b16 %v509, %v507
        %v546 = vpack.c.b16 %v512, %v510
        %v547 = vpack.c.b16 %v513, %v511
        %v548 = vpack.c.b16 %v516, %v514
        %v549 = vpack.c.b16 %v517, %v515
        %582 = vmatpush.bf16.msra.mxu0 %v532
        %583 = vmatpush.bf16.msra.mxu0 %v530
        %584 = vmatpush.bf16.msra.mxu0 %v528
        %585 = vmatpush.bf16.msra.mxu0 %v526
        %586 = vmatpush.bf16.msra.mxu0 %v524
        %587 = vmatpush.bf16.msra.mxu0 %v522
        %588 = vmatpush.bf16.msra.mxu0 %v520
        %589 = vmatpush.bf16.msra.mxu0 %v518
        %590 = vmatmul.bf16.gmra.mxu0 %v390
        %v591 = vpop.f32.mrf.mxu0
        %v592 = vadd.f32 0.0, %v591
        %v593 = vpop.f32.mrf.mxu0
        %v594 = vadd.f32 0.0, %v593
        %595 = vmatmul.bf16.gmra.mxu0 %v392
        %v596 = vpop.f32.mrf.mxu0
        %v597 = vadd.f32 0.0, %v596
        %v598 = vpop.f32.mrf.mxu0
        %v599 = vadd.f32 0.0, %v598
        %600 = vmatmul.bf16.gmra.mxu0 %v394
        %v601 = vpop.f32.mrf.mxu0
        %v602 = vadd.f32 0.0, %v601
        %v603 = vpop.f32.mrf.mxu0
        %v604 = vadd.f32 0.0, %v603
        %605 = vmatmul.bf16.gmra.mxu0 %v396
        %v606 = vpop.f32.mrf.mxu0
        %v607 = vadd.f32 0.0, %v606
        %v608 = vpop.f32.mrf.mxu0
        %v609 = vadd.f32 0.0, %v608
        %610 = vmatmul.bf16.gmra.mxu0 %v398
        %v611 = vpop.f32.mrf.mxu0
        %v612 = vadd.f32 0.0, %v611
        %v613 = vpop.f32.mrf.mxu0
        %v614 = vadd.f32 0.0, %v613
        %615 = vmatmul.bf16.gmra.mxu0 %v400
        %v616 = vpop.f32.mrf.mxu0
        %v617 = vadd.f32 0.0, %v616
        %v618 = vpop.f32.mrf.mxu0
        %v619 = vadd.f32 0.0, %v618
        %620 = vmatmul.bf16.gmra.mxu0 %v402
        %v621 = vpop.f32.mrf.mxu0
        %v622 = vadd.f32 0.0, %v621
        %v623 = vpop.f32.mrf.mxu0
        %v624 = vadd.f32 0.0, %v623
        %625 = vmatmul.bf16.gmra.mxu0 %v404
        %v626 = vpop.f32.mrf.mxu0
        %v627 = vadd.f32 0.0, %v626
        %v628 = vpop.f32.mrf.mxu0
        %v629 = vadd.f32 0.0, %v628
        %630 = vdwg.mxu0
        %631 = vmatpush.bf16.msra.mxu0 %v548
        %632 = vmatpush.bf16.msra.mxu0 %v546
        %633 = vmatpush.bf16.msra.mxu0 %v544
        %634 = vmatpush.bf16.msra.mxu0 %v542
        %635 = vmatpush.bf16.msra.mxu0 %v540
        %636 = vmatpush.bf16.msra.mxu0 %v538
        %637 = vmatpush.bf16.msra.mxu0 %v536
        %638 = vmatpush.bf16.msra.mxu0 %v534
        %639 = vmatmul.bf16.gmra.mxu0 %v391
        %v640 = vpop.f32.mrf.mxu0
        %v641 = vadd.f32 %v592, %v640
        %v642 = vpop.f32.mrf.mxu0
        %v643 = vadd.f32 %v594, %v642
        %644 = vmatmul.bf16.gmra.mxu0 %v393
        %v645 = vpop.f32.mrf.mxu0
        %v646 = vadd.f32 %v597, %v645
        %v647 = vpop.f32.mrf.mxu0
        %v648 = vadd.f32 %v599, %v647
        %649 = vmatmul.bf16.gmra.mxu0 %v395
        %v650 = vpop.f32.mrf.mxu0
        %v651 = vadd.f32 %v602, %v650
        %v652 = vpop.f32.mrf.mxu0
        %v653 = vadd.f32 %v604, %v652
        %654 = vmatmul.bf16.gmra.mxu0 %v397
        %v655 = vpop.f32.mrf.mxu0
        %v656 = vadd.f32 %v607, %v655
        %v657 = vpop.f32.mrf.mxu0
        %v658 = vadd.f32 %v609, %v657
        %659 = vmatmul.bf16.gmra.mxu0 %v399
        %v660 = vpop.f32.mrf.mxu0
        %v661 = vadd.f32 %v612, %v660
        %v662 = vpop.f32.mrf.mxu0
        %v663 = vadd.f32 %v614, %v662
        %664 = vmatmul.bf16.gmra.mxu0 %v401
        %v665 = vpop.f32.mrf.mxu0
        %v666 = vadd.f32 %v617, %v665
        %v667 = vpop.f32.mrf.mxu0
        %v668 = vadd.f32 %v619, %v667
        %669 = vmatmul.bf16.gmra.mxu0 %v403
        %v670 = vpop.f32.mrf.mxu0
        %v671 = vadd.f32 %v622, %v670
        %v672 = vpop.f32.mrf.mxu0
        %v673 = vadd.f32 %v624, %v672
        %674 = vmatmul.bf16.gmra.mxu0 %v405
        %v675 = vpop.f32.mrf.mxu0
        %v676 = vadd.f32 %v627, %v675
        %v677 = vpop.f32.mrf.mxu0
        %v678 = vadd.f32 %v629, %v677
        %679 = vdwg.mxu0
        %680 = vmatpush.bf16.msra.mxu0 %v533
        %681 = vmatpush.bf16.msra.mxu0 %v531
        %682 = vmatpush.bf16.msra.mxu0 %v529
        %683 = vmatpush.bf16.msra.mxu0 %v527
        %684 = vmatpush.bf16.msra.mxu0 %v525
        %685 = vmatpush.bf16.msra.mxu0 %v523
        %686 = vmatpush.bf16.msra.mxu0 %v521
        %687 = vmatpush.bf16.msra.mxu0 %v519
        %688 = vmatmul.bf16.gmra.mxu0 %v390
        %v689 = vpop.f32.mrf.mxu0
        %v690 = vadd.f32 0.0, %v689
        %v691 = vpop.f32.mrf.mxu0
        %v692 = vadd.f32 0.0, %v691
        %693 = vmatmul.bf16.gmra.mxu0 %v392
        %v694 = vpop.f32.mrf.mxu0
        %v695 = vadd.f32 0.0, %v694
        %v696 = vpop.f32.mrf.mxu0
        %v697 = vadd.f32 0.0, %v696
        %698 = vmatmul.bf16.gmra.mxu0 %v394
        %v699 = vpop.f32.mrf.mxu0
        %v700 = vadd.f32 0.0, %v699
        %v701 = vpop.f32.mrf.mxu0
        %v702 = vadd.f32 0.0, %v701
        %703 = vmatmul.bf16.gmra.mxu0 %v396
        %v704 = vpop.f32.mrf.mxu0
        %v705 = vadd.f32 0.0, %v704
        %v706 = vpop.f32.mrf.mxu0
        %v707 = vadd.f32 0.0, %v706
        %708 = vmatmul.bf16.gmra.mxu0 %v398
        %v709 = vpop.f32.mrf.mxu0
        %v710 = vadd.f32 0.0, %v709
        %v711 = vpop.f32.mrf.mxu0
        %v712 = vadd.f32 0.0, %v711
        %713 = vmatmul.bf16.gmra.mxu0 %v400
        %v714 = vpop.f32.mrf.mxu0
        %v715 = vadd.f32 0.0, %v714
        %v716 = vpop.f32.mrf.mxu0
        %v717 = vadd.f32 0.0, %v716
        %718 = vmatmul.bf16.gmra.mxu0 %v402
        %v719 = vpop.f32.mrf.mxu0
        %v720 = vadd.f32 0.0, %v719
        %v721 = vpop.f32.mrf.mxu0
        %v722 = vadd.f32 0.0, %v721
        %723 = vmatmul.bf16.gmra.mxu0 %v404
        %v724 = vpop.f32.mrf.mxu0
        %v725 = vadd.f32 0.0, %v724
        %v726 = vpop.f32.mrf.mxu0
        %v727 = vadd.f32 0.0, %v726
        %728 = vdwg.mxu0
        %729 = vmatpush.bf16.msra.mxu0 %v549
        %730 = vmatpush.bf16.msra.mxu0 %v547
        %731 = vmatpush.bf16.msra.mxu0 %v545
        %732 = vmatpush.bf16.msra.mxu0 %v543
        %733 = vmatpush.bf16.msra.mxu0 %v541
        %734 = vmatpush.bf16.msra.mxu0 %v539
        %735 = vmatpush.bf16.msra.mxu0 %v537
        %736 = vmatpush.bf16.msra.mxu0 %v535
        %737 = vmatmul.bf16.gmra.mxu0 %v391
        %v738 = vpop.f32.mrf.mxu0
        %v739 = vadd.f32 %v690, %v738
        %v740 = vpop.f32.mrf.mxu0
        %v741 = vadd.f32 %v692, %v740
        %742 = vmatmul.bf16.gmra.mxu0 %v393
        %v743 = vpop.f32.mrf.mxu0
        %v744 = vadd.f32 %v695, %v743
        %v745 = vpop.f32.mrf.mxu0
        %v746 = vadd.f32 %v697, %v745
        %747 = vmatmul.bf16.gmra.mxu0 %v395
        %v748 = vpop.f32.mrf.mxu0
        %v749 = vadd.f32 %v700, %v748
        %v750 = vpop.f32.mrf.mxu0
        %v751 = vadd.f32 %v702, %v750
        %752 = vmatmul.bf16.gmra.mxu0 %v397
        %v753 = vpop.f32.mrf.mxu0
        %v754 = vadd.f32 %v705, %v753
        %v755 = vpop.f32.mrf.mxu0
        %v756 = vadd.f32 %v707, %v755
        %757 = vmatmul.bf16.gmra.mxu0 %v399
        %v758 = vpop.f32.mrf.mxu0
        %v759 = vadd.f32 %v710, %v758
        %v760 = vpop.f32.mrf.mxu0
        %v761 = vadd.f32 %v712, %v760
        %762 = vmatmul.bf16.gmra.mxu0 %v401
        %v763 = vpop.f32.mrf.mxu0
        %v764 = vadd.f32 %v715, %v763
        %v765 = vpop.f32.mrf.mxu0
        %v766 = vadd.f32 %v717, %v765
        %767 = vmatmul.bf16.gmra.mxu0 %v403
        %v768 = vpop.f32.mrf.mxu0
        %v769 = vadd.f32 %v720, %v768
        %v770 = vpop.f32.mrf.mxu0
        %v771 = vadd.f32 %v722, %v770
        %772 = vmatmul.bf16.gmra.mxu0 %v405
        %v773 = vpop.f32.mrf.mxu0
        %v774 = vadd.f32 %v725, %v773
        %v775 = vpop.f32.mrf.mxu0
        %v776 = vadd.f32 %v727, %v775
        %777 = vdwg.mxu0
        %v778 = vadd.f32 %v262, %v641
        %v779 = vadd.f32 %v263, %v739
        %v780 = vadd.f32 %v264, %v643
        %v781 = vadd.f32 %v265, %v741
        %v782 = vadd.f32 %v266, %v646
        %v783 = vadd.f32 %v267, %v744
        %v784 = vadd.f32 %v268, %v648
        %v785 = vadd.f32 %v269, %v746
        %v786 = vadd.f32 %v270, %v651
        %v787 = vadd.f32 %v271, %v749
        %v788 = vadd.f32 %v272, %v653
        %v789 = vadd.f32 %v273, %v751
        %v790 = vadd.f32 %v274, %v656
        %v791 = vadd.f32 %v275, %v754
        %v792 = vadd.f32 %v276, %v658
        %v793 = vadd.f32 %v277, %v756
        %v794 = vadd.f32 %v278, %v661
        %v795 = vadd.f32 %v279, %v759
        %v796 = vadd.f32 %v280, %v663
        %v797 = vadd.f32 %v281, %v761
        %v798 = vadd.f32 %v282, %v666
        %v799 = vadd.f32 %v283, %v764
        %v800 = vadd.f32 %v284, %v668
        %v801 = vadd.f32 %v285, %v766
        %v802 = vadd.f32 %v286, %v671
        %v803 = vadd.f32 %v287, %v769
        %v804 = vadd.f32 %v288, %v673
        %v805 = vadd.f32 %v289, %v771
        %v806 = vadd.f32 %v290, %v676
        %v807 = vadd.f32 %v291, %v774
        %v808 = vadd.f32 %v292, %v678
        %v809 = vadd.f32 %v293, %v776
        %810 = vst [vmem:[#allocation2] sm:$0xff] %v778
        %811 = vst [vmem:[#allocation2 + $0x8] sm:$0xff] %v779
        %812 = vst [vmem:[#allocation2 + $0x10] sm:$0xff] %v780
        %813 = vst [vmem:[#allocation2 + $0x18] sm:$0xff] %v781
        %814 = vst [vmem:[#allocation2 + $0x20] sm:$0xff] %v782
        %815 = vst [vmem:[#allocation2 + $0x28] sm:$0xff] %v783
        %816 = vst [vmem:[#allocation2 + $0x30] sm:$0xff] %v784
        %817 = vst [vmem:[#allocation2 + $0x38] sm:$0xff] %v785
        %818 = vst [vmem:[#allocation2 + $0x40] sm:$0xff] %v786
        %819 = vst [vmem:[#allocation2 + $0x48] sm:$0xff] %v787
        %820 = vst [vmem:[#allocation2 + $0x50] sm:$0xff] %v788
        %821 = vst [vmem:[#allocation2 + $0x58] sm:$0xff] %v789
        %822 = vst [vmem:[#allocation2 + $0x60] sm:$0xff] %v790
        %823 = vst [vmem:[#allocation2 + $0x68] sm:$0xff] %v791
        %824 = vst [vmem:[#allocation2 + $0x70] sm:$0xff] %v792
        %825 = vst [vmem:[#allocation2 + $0x78] sm:$0xff] %v793
        %826 = vst [vmem:[#allocation2 + $0x80] sm:$0xff] %v794
        %827 = vst [vmem:[#allocation2 + $0x88] sm:$0xff] %v795
        %828 = vst [vmem:[#allocation2 + $0x90] sm:$0xff] %v796
        %829 = vst [vmem:[#allocation2 + $0x98] sm:$0xff] %v797
        %830 = vst [vmem:[#allocation2 + $0xa0] sm:$0xff] %v798
        %831 = vst [vmem:[#allocation2 + $0xa8] sm:$0xff] %v799
        %832 = vst [vmem:[#allocation2 + $0xb0] sm:$0xff] %v800
        %833 = vst [vmem:[#allocation2 + $0xb8] sm:$0xff] %v801
        %834 = vst [vmem:[#allocation2 + $0xc0] sm:$0xff] %v802
        %835 = vst [vmem:[#allocation2 + $0xc8] sm:$0xff] %v803
        %836 = vst [vmem:[#allocation2 + $0xd0] sm:$0xff] %v804
        %837 = vst [vmem:[#allocation2 + $0xd8] sm:$0xff] %v805
        %838 = vst [vmem:[#allocation2 + $0xe0] sm:$0xff] %v806
        %839 = vst [vmem:[#allocation2 + $0xe8] sm:$0xff] %v807
        %840 = vst [vmem:[#allocation2 + $0xf0] sm:$0xff] %v808
        %841 = vst [vmem:[#allocation2 + $0xf8] sm:$0xff] %v809
        // Predicated region
        $region41: #{tpu_custom_call.1} parent=27 // pred_check
          %p842 = pneg %p226
        $region42: #{tpu_custom_call.1} parent=27 // pred_check_branch
          %844 = sbr.rel (%p842) target = $region44
        $region43: #{tpu_custom_call.1} parent=27 // pred_region
          %v845 = vld [vmem:[#allocation2] sm:$0xff]
          %v846 = vld [vmem:[#allocation2 + $0x8] sm:$0xff]
          %v847 = vld [vmem:[#allocation2 + $0x10] sm:$0xff]
          %v848 = vld [vmem:[#allocation2 + $0x18] sm:$0xff]
          %v849 = vld [vmem:[#allocation2 + $0x20] sm:$0xff]
          %v850 = vld [vmem:[#allocation2 + $0x28] sm:$0xff]
          %v851 = vld [vmem:[#allocation2 + $0x30] sm:$0xff]
          %v852 = vld [vmem:[#allocation2 + $0x38] sm:$0xff]
          %v853 = vld [vmem:[#allocation2 + $0x40] sm:$0xff]
          %v854 = vld [vmem:[#allocation2 + $0x48] sm:$0xff]
          %v855 = vld [vmem:[#allocation2 + $0x50] sm:$0xff]
          %v856 = vld [vmem:[#allocation2 + $0x58] sm:$0xff]
          %v857 = vld [vmem:[#allocation2 + $0x60] sm:$0xff]
          %v858 = vld [vmem:[#allocation2 + $0x68] sm:$0xff]
          %v859 = vld [vmem:[#allocation2 + $0x70] sm:$0xff]
          %v860 = vld [vmem:[#allocation2 + $0x78] sm:$0xff]
          %v861 = vld [vmem:[#allocation2 + $0x80] sm:$0xff]
          %v862 = vld [vmem:[#allocation2 + $0x88] sm:$0xff]
          %v863 = vld [vmem:[#allocation2 + $0x90] sm:$0xff]
          %v864 = vld [vmem:[#allocation2 + $0x98] sm:$0xff]
          %v865 = vld [vmem:[#allocation2 + $0xa0] sm:$0xff]
          %v866 = vld [vmem:[#allocation2 + $0xa8] sm:$0xff]
          %v867 = vld [vmem:[#allocation2 + $0xb0] sm:$0xff]
          %v868 = vld [vmem:[#allocation2 + $0xb8] sm:$0xff]
          %v869 = vld [vmem:[#allocation2 + $0xc0] sm:$0xff]
          %v870 = vld [vmem:[#allocation2 + $0xc8] sm:$0xff]
          %v871 = vld [vmem:[#allocation2 + $0xd0] sm:$0xff]
          %v872 = vld [vmem:[#allocation2 + $0xd8] sm:$0xff]
          %v873 = vld [vmem:[#allocation2 + $0xe0] sm:$0xff]
          %v874 = vld [vmem:[#allocation2 + $0xe8] sm:$0xff]
          %v875 = vld [vmem:[#allocation2 + $0xf0] sm:$0xff]
          %v876 = vld [vmem:[#allocation2 + $0xf8] sm:$0xff]
          %v877 = vpack.c.bf16 %v846, %v845
          %v878 = vpack.c.bf16 %v848, %v847
          %v879 = vpack.c.bf16 %v850, %v849
          %v880 = vpack.c.bf16 %v852, %v851
          %v881 = vpack.c.bf16 %v854, %v853
          %v882 = vpack.c.bf16 %v856, %v855
          %v883 = vpack.c.bf16 %v858, %v857
          %v884 = vpack.c.bf16 %v860, %v859
          %v885 = vpack.c.bf16 %v862, %v861
          %v886 = vpack.c.bf16 %v864, %v863
          %v887 = vpack.c.bf16 %v866, %v865
          %v888 = vpack.c.bf16 %v868, %v867
          %v889 = vpack.c.bf16 %v870, %v869
          %v890 = vpack.c.bf16 %v872, %v871
          %v891 = vpack.c.bf16 %v874, %v873
          %v892 = vpack.c.bf16 %v876, %v875
          %893 = vst [vmem:[%s219] sm:$0xff] %v877
          %894 = vst [vmem:[%s219 + $0x8] sm:$0xff] %v878
          %895 = vst [vmem:[%s219 + $0x10] sm:$0xff] %v879
          %896 = vst [vmem:[%s219 + $0x18] sm:$0xff] %v880
          %897 = vst [vmem:[%s219 + $0x20] sm:$0xff] %v881
          %898 = vst [vmem:[%s219 + $0x28] sm:$0xff] %v882
          %899 = vst [vmem:[%s219 + $0x30] sm:$0xff] %v883
          %900 = vst [vmem:[%s219 + $0x38] sm:$0xff] %v884
          %901 = vst [vmem:[%s219 + $0x40] sm:$0xff] %v885
          %902 = vst [vmem:[%s219 + $0x48] sm:$0xff] %v886
          %903 = vst [vmem:[%s219 + $0x50] sm:$0xff] %v887
          %904 = vst [vmem:[%s219 + $0x58] sm:$0xff] %v888
          %905 = vst [vmem:[%s219 + $0x60] sm:$0xff] %v889
          %906 = vst [vmem:[%s219 + $0x68] sm:$0xff] %v890
          %907 = vst [vmem:[%s219 + $0x70] sm:$0xff] %v891
          %908 = vst [vmem:[%s219 + $0x78] sm:$0xff] %v892
        $region44: #{tpu_custom_call.1} parent=27 // pred_fallthru
          _
        %s909 = sand.u32 %s105, 1
        %s910 = scalar_lea.sflag [#allocation5], %s909
        %s911 = sand.u32 %s105, 1
        %s912 = smul.addr %s911, 128
        %s913 = scalar_lea.vmem [#allocation8], %s912
        // Predicated region
        $region45: #{tpu_custom_call.1} parent=27 // pred_check
          %p914 = pneg %p115
        $region46: #{tpu_custom_call.1} parent=27 // pred_check_branch
          %916 = sbr.rel (%p914) target = $region48
        $region47: #{tpu_custom_call.1} parent=27 // pred_region
          %s917 = smul.u32 16, %s25
          %s918 = smul.u32 2, %s26
          %920 = vsyncadd %s910, 0
          %s921 = smul.addr %s917, 4
          %s922 = sadd.s32 %s918, %s921
          %s923 = smul.addr %s922, 4
          %s924 = scalar_lea.hbm %s2, %s923
          %s925 = sshll.u32 %s913, 4
          %s926 = int_to_ptr.vmem [resolvable:$true] %s925
          %s927 = sshll.u32 %s924, 4
          %s928 = int_to_ptr.hbm [resolvable:$true] %s927
          %933 = dma.vmem_to_hbm [thread:$0]  %s926, 2048, %s928, %s910, 128, 256, 8
        $region48: #{tpu_custom_call.1} parent=27 // pred_fallthru
          _
      $region28: #{tpu_custom_call.1} parent=5 // pred_fallthru
        _
      %p934 = scmp.le.s32.totalorder 2, %s15
      // Predicated region
      $region49: #{tpu_custom_call.1} parent=5 // pred_check
        %p935 = pneg %p934
      $region50: #{tpu_custom_call.1} parent=5 // pred_check_branch
        %937 = sbr.rel (%p935) target = $region52
      $region51: #{tpu_custom_call.1} parent=5 // pred_region
        %s938 = ssub.s32 %s15, 2
        // Predicated region
        $region53: #{tpu_custom_call.1} parent=51 // pred_check
          %p939 = pneg %p121
        $region54: #{tpu_custom_call.1} parent=51 // pred_check_branch
          %941 = sbr.rel (%p939) target = $region56
        $region55: #{tpu_custom_call.1} parent=51 // pred_region
          %s942 = sand.u32 %s106, 1
          %s943 = scalar_lea.sflag [#allocation5], %s942
          %s944 = sand.u32 %s106, 1
          %s945 = smul.addr %s944, 128
          %s946 = scalar_lea.vmem [#allocation8], %s945
          %948 = dma.done %s943, 2048
        $region56: #{tpu_custom_call.1} parent=51 // pred_fallthru
          _
      $region52: #{tpu_custom_call.1} parent=5 // pred_fallthru
        _
    $region6: #{tpu_custom_call.1} parent=1 // loop_footer
      %s19 = sadd.s32 1, %s15
    $region7: #{tpu_custom_call.1} parent=1 // loop_footer_branch
      %14 = sbr.rel target = $region3
    $region8: #{tpu_custom_call.1} parent=1 // loop_exit
      _
    %949 = vsyncpa [#allocation4], 1
    %s950 = scalar_lea.sflag [#allocation4], 1
    %951 = vsyncpa %s950, 1
    %952 = vsyncpa [#allocation7], 1
    %s953 = scalar_lea.sflag [#allocation7], 1
    %954 = vsyncpa %s953, 1
    %955 = vsyncpa [#allocation5], 1
    %s956 = scalar_lea.sflag [#allocation5], 1
    %957 = vsyncpa %s956, 1

</llo_original>
